<compile_context>
chip_gen: v7x
topology: tpu7x:2x2x1
jax: 0.10.0
libtpu: 0.0.40
codegen_flags: <defaults>
</compile_context>

<pallas_src>
import copy
import functools
from typing import Any, NamedTuple, Tuple

import jax
import jax.numpy as jnp
from jax.experimental import pallas as pl
from jax.experimental.pallas import tpu as pltpu

LANE = 128
SUBLANE = 8
BF16_SUBLANE = 16

# Packed-parameter layout: wide lane-dense rows so each DMA moves large
# contiguous chunks, stores are unmasked, and the grid trip count is small.
PACK_WIDTH = 1024          # multiple of 128 lanes
EMA_MAX_TILE_ROWS = 512    # 512 * 1024 * 4 B = 2 MiB/block -> 12 MiB live (v5e safe)


def _round_up(x, m):
    return -(-x // m) * m


def _choose_tile_rows(rows, max_tile_rows=EMA_MAX_TILE_ROWS):
    """rows is a multiple of SUBLANE.  Pick the largest multiple of SUBLANE that
    (a) divides rows exactly (no pure-padding read+write traffic),
    (b) is <= max_tile_rows (keeps 3 operands x 2 buffers under v5e's 16 MiB
        scoped-VMEM default and v7x's smaller VMEM),
    (c) leaves >= 2 grid blocks when rows allows it (both v7x TCs participate)."""
    cap = min(max_tile_rows, rows)
    if rows >= 2 * SUBLANE:
        cap = min(cap, (rows // 2) // SUBLANE * SUBLANE)
    for t in range(cap, SUBLANE - 1, -SUBLANE):
        if rows % t == 0:
            return t
    return SUBLANE  # rows is a multiple of SUBLANE, so this always divides


# --------------------------- EMA update kernel -------------------------------

def _ema_kernel(ema_ref, model_ref, out_ref, *, decay):
    # elementwise streaming op: out = decay * ema + (1 - decay) * model
    out_ref[...] = decay * ema_ref[...] + (1.0 - decay) * model_ref[...]


@functools.partial(jax.jit,
                   static_argnames=("decay", "tile_rows", "rows", "width", "n"),
                   donate_argnums=(0,))
def _ema_update_fused(ema_packed, model_leaves, *, decay, tile_rows, rows,
                      width, n):
    """Fused: pack the training-model leaves into a lane-dense slab and run the
    EMA rule on the packed slabs, all inside one jit (one dispatch, the pack
    fuses with the kernel's input instead of extra full-param HBM round trips)."""
    flat = jnp.concatenate([jnp.reshape(l, (-1,)).astype(jnp.float32)
                            for l in model_leaves])
    flat = jnp.pad(flat, (0, rows * width - n))
    model_packed = flat.reshape(rows, width)

    kernel = functools.partial(_ema_kernel, decay=float(decay))
    return pl.pallas_call(
        kernel,
        out_shape=jax.ShapeDtypeStruct((rows, width), jnp.float32),
        grid=(rows // tile_rows,),
        in_specs=[
            pl.BlockSpec((tile_rows, width), lambda i: (i, 0)),
            pl.BlockSpec((tile_rows, width), lambda i: (i, 0)),
        ],
        out_specs=pl.BlockSpec((tile_rows, width), lambda i: (i, 0)),
        # Update the EMA slab in place (donated at the jit boundary).
        input_output_aliases={0: 0},
        compiler_params=pltpu.CompilerParams(
            dimension_semantics=("parallel",)),
    )(ema_packed, model_packed)


# --------------------------- param packing glue ------------------------------

class _PackMeta(NamedTuple):
    treedef: Any
    shapes: Tuple[Tuple[int, ...], ...]
    sizes: Tuple[int, ...]
    n: int
    rows: int
    width: int
    tile_rows: int


def _pack_tree(tree, width=PACK_WIDTH, max_tile_rows=EMA_MAX_TILE_ROWS):
    """Flatten a param tree into a lane-dense (rows, width) f32 slab (done once)."""
    leaves, treedef = jax.tree_util.tree_flatten(tree)
    shapes = tuple(tuple(l.shape) for l in leaves)
    sizes = tuple(int(l.size) for l in leaves)
    n = sum(sizes)
    rows = _round_up(-(-n // width), SUBLANE)
    tile_rows = _choose_tile_rows(rows, max_tile_rows)
    flat = jnp.concatenate([jnp.reshape(l, (-1,)).astype(jnp.float32)
                            for l in leaves])
    flat = jnp.pad(flat, (0, rows * width - n))
    packed = flat.reshape(rows, width)
    meta = _PackMeta(treedef=treedef, shapes=shapes, sizes=sizes, n=n,
                     rows=rows, width=width, tile_rows=tile_rows)
    return packed, meta


def _unpack(packed, meta):
    flat = packed.reshape(-1)[:meta.n]
    out, off = [], 0
    for shape, size in zip(meta.shapes, meta.sizes):
        out.append(flat[off:off + size].reshape(shape))
        off += size
    return jax.tree_util.tree_unflatten(meta.treedef, out)


# --------------------------- tiled linear + ReLU forward ----------------------

def _linear_relu_kernel(x_ref, w_ref, b_ref, o_ref, acc_ref):
    k = pl.program_id(2)
    p = jnp.dot(x_ref[...], w_ref[...], preferred_element_type=jnp.float32)

    @pl.when(k == 0)
    def _():
        acc_ref[...] = p          # first K step writes directly (no zero-init pass)

    @pl.when(k > 0)
    def _():
        acc_ref[...] += p

    @pl.when(k == pl.num_programs(2) - 1)
    def _():
        y = acc_ref[...] + b_ref[...]
        o_ref[...] = jnp.maximum(y, 0.0).astype(o_ref.dtype)


def prepare_linear(w, b, *, tn_max=512, tk_max=1024):
    """Pad+cast the weight/bias ONCE per param update (cached by the module).

    Tile caps: tn<=512, tk<=1024 match the 256x256 MXU on v6e/v7x while staying
    128-aligned (native for v5e's 4x128^2 MXU); bf16 blocks + f32 accumulator
    stay a few MiB with double buffering on every generation."""
    K, N = w.shape
    tn = min(tn_max, _round_up(N, LANE))
    tk = min(tk_max, _round_up(K, LANE))
    Np = _round_up(N, tn)
    Kp = _round_up(K, tk)
    wp = jnp.pad(w, ((0, Kp - K), (0, Np - N))).astype(jnp.bfloat16)
    bp = jnp.pad(b.astype(jnp.float32).reshape(1, -1), ((0, 0), (0, Np - N)))
    return wp, bp, (int(N), int(tn), int(tk))


@functools.partial(jax.jit, static_argnames=("n_out", "tn", "tk", "tm_max"))
def linear_relu_prepacked(x, wp, bp, *, n_out, tn, tk, tm_max=256):
    """relu(x @ w + b) with pre-padded bf16 weight / f32 bias.

    bf16 MXU inputs, f32 accumulation, bf16 lane-dense output; only the
    activation is padded per call.  M-tiles rounded to 16 (bf16 sublane tile)."""
    M, K = x.shape
    Kp, Np = wp.shape

    tm = min(tm_max, _round_up(M, BF16_SUBLANE))
    Mp = _round_up(M, tm)
    xp = jnp.pad(x, ((0, Mp - M), (0, Kp - K))).astype(jnp.bfloat16)

    grid = (Mp // tm, Np // tn, Kp // tk)
    out = pl.pallas_call(
        _linear_relu_kernel,
        out_shape=jax.ShapeDtypeStruct((Mp, Np), jnp.bfloat16),
        grid=grid,
        in_specs=[
            pl.BlockSpec((tm, tk), lambda i, j, k: (i, k)),
            pl.BlockSpec((tk, tn), lambda i, j, k: (k, j)),
            pl.BlockSpec((1, tn), lambda i, j, k: (0, j)),
        ],
        out_specs=pl.BlockSpec((tm, tn), lambda i, j, k: (i, j)),
        scratch_shapes=[pltpu.VMEM((tm, tn), jnp.float32)],
        compiler_params=pltpu.CompilerParams(
            dimension_semantics=("parallel", "parallel", "arbitrary")),
    )(xp, wp, bp)
    if (Mp, Np) != (M, n_out):
        out = out[:M, :n_out]
    return out


# --------------------------- synthetic inner model ---------------------------

class SmallModel:
    """Stand-in for the wrapped model: flatten NCHW -> Linear -> ReLU."""

    def __init__(self, key, in_features, hidden):
        k1, k2 = jax.random.split(key)
        self.params = {
            "weight": (jax.random.normal(k1, (in_features, hidden), jnp.float32)
                       * 0.02),
            "bias": jax.random.normal(k2, (1, hidden), jnp.float32) * 0.02,
        }
        self.buffers = {
            "running_stat": jnp.zeros((1, hidden), jnp.float32),
        }
        self._prepared = None  # cached (wp_bf16, bp_f32, n_out, tn, tk)

    def set_params(self, params):
        self.params = dict(params)
        self._prepared = None  # invalidate padded/bf16 weight cache

    def _get_prepared(self):
        if self._prepared is None:
            wp, bp, (n_out, tn, tk) = prepare_linear(self.params["weight"],
                                                     self.params["bias"])
            self._prepared = (wp, bp, n_out, tn, tk)
        return self._prepared

    def __call__(self, x_nchw, unsupervised=False):
        # `unsupervised` selects a head in the real wrapped model; the synthetic
        # model has a single head, so it does not change the computation.
        # TODO(synk): wrapped model's unsupervised branch is model-specific.
        B = x_nchw.shape[0]
        x = x_nchw.reshape(B, -1)  # NCHW flattened row-major, matches torch .view
        wp, bp, n_out, tn, tk = self._get_prepared()
        return linear_relu_prepacked(x, wp, bp, n_out=n_out, tn=tn, tk=tk)


# --------------------------- ModelEMA ----------------------------------------

class ModelEMA:
    def __init__(self, model, decay=0.999, device=None):
        self.module = copy.copy(model)
        self.module.set_params(dict(model.params))
        self.module.buffers = dict(model.buffers)
        self.decay = decay
        self.device = device  # device placement handled by JAX; kept for parity
        # Persistent packed EMA state: pack once, update in place each step,
        # unpack lazily only when the forward pass (or state_dict) needs leaves.
        self._ema_packed, self._meta = _pack_tree(self.module.params)
        self._params_dirty = False

    def _materialize(self):
        if self._params_dirty:
            self.module.set_params(_unpack(self._ema_packed, self._meta))
            self._params_dirty = False

    def forward(self, inp, unsupervised=False):
        self._materialize()
        return self.module(inp, unsupervised)

    __call__ = forward

    def update_parameters(self, model):
        leaves, treedef = jax.tree_util.tree_flatten(model.params)
        if (treedef != self._meta.treedef
                or tuple(tuple(l.shape) for l in leaves) != self._meta.shapes):
            raise ValueError("model parameter tree does not match EMA state")
        # Single fused jit: pack the training params + EMA rule + in-place alias.
        self._ema_packed = _ema_update_fused(
            self._ema_packed, leaves,
            decay=float(self.decay),
            tile_rows=self._meta.tile_rows,
            rows=self._meta.rows, width=self._meta.width, n=self._meta.n)
        self._params_dirty = True
        # buffers: straight copy (torch: ema_v.copy_(model_v))
        self.module.buffers = {k: v for k, v in model.buffers.items()}

    def state_dict(self):
        self._materialize()
        return {"params": dict(self.module.params),
                "buffers": dict(self.module.buffers)}

    def load_state_dict(self, state_dict):
        self.module.set_params(dict(state_dict["params"]))
        self.module.buffers = dict(state_dict["buffers"])
        self._ema_packed, self._meta = _pack_tree(self.module.params)
        self._params_dirty = False


# --------------------------- main ---------------------------------------------

if __name__ == "__main__":
    B, C, H, W = 2, 4, 16, 16
    HIDDEN = 32
    IN_FEATURES = C * H * W  # 1024

    key = jax.random.PRNGKey(0)
    k_model, k_train, k_x = jax.random.split(key, 3)

    # EMA-tracked model and a "current training" model with different params.
    base_model = SmallModel(k_model, IN_FEATURES, HIDDEN)
    ema = ModelEMA(base_model, decay=0.999)

    train_model = SmallModel(k_train, IN_FEATURES, HIDDEN)
    train_model.buffers["running_stat"] = jnp.full((1, HIDDEN), 0.5, jnp.float32)

    # EMA update (fused pack + Pallas elementwise kernel on the packed slab).
    ema.update_parameters(train_model)

    # Reference check of the EMA rule.
    d = ema.decay
    ref_w = d * base_model.params["weight"] + (1 - d) * train_model.params["weight"]
    ref_b = d * base_model.params["bias"] + (1 - d) * train_model.params["bias"]
    ema_params = ema.state_dict()["params"]
    assert jnp.allclose(ema_params["weight"], ref_w, atol=1e-6)
    assert jnp.allclose(ema_params["bias"], ref_b, atol=1e-6)
    assert jnp.allclose(ema.module.buffers["running_stat"],
                        train_model.buffers["running_stat"])

    # Forward pass through the EMA module (tiled Pallas matmul + bias + ReLU).
    x = jax.random.normal(k_x, (B, C, H, W), jnp.float32)
    out = ema(x, unsupervised=False)
    out = jax.block_until_ready(out)

    # Reference forward (f32); kernel uses bf16 MXU inputs and bf16 output
    # -> looser tolerance.
    ref_out = jnp.maximum(x.reshape(B, -1) @ ref_w + ref_b, 0.0)
    assert out.shape == (B, HIDDEN)
    assert jnp.allclose(out.astype(jnp.float32), ref_out, atol=3e-2, rtol=3e-2)

    print("KERNEL_OK")
</pallas_src>

<mosaic_0001>
module attributes {stable_mosaic.version = 11 : i64} {
  func.func @_ema_kernel(%arg0: i32, %arg1: memref<8x1024xf32, #tpu.memory_space<vmem>>, %arg2: memref<8x1024xf32, #tpu.memory_space<vmem>>, %arg3: memref<8x1024xf32, #tpu.memory_space<vmem>>) attributes {dimension_semantics = [#tpu.dimension_semantics<parallel>], iteration_bounds = array<i64: 5>, scalar_prefetch = 0 : i64, scratch_operands = 0 : i64, tpu.core_type = #tpu.core_type<tc>, window_params = [{transform_indices = @transform_0, window_bounds = array<i64: 8, 1024>}, {transform_indices = @transform_1, window_bounds = array<i64: 8, 1024>}, {transform_indices = @transform_2, window_bounds = array<i64: 8, 1024>}]} {
    %c0 = arith.constant 0 : index
    %c0_0 = arith.constant 0 : index
    %0 = vector.load %arg1[%c0, %c0_0] : memref<8x1024xf32, #tpu.memory_space<vmem>>, vector<8x1024xf32>
    %cst = arith.constant 9.990000e-01 : f32
    %1 = vector.broadcast %cst : f32 to vector<8x1024xf32>
    %2 = arith.mulf %1, %0 : vector<8x1024xf32>
    %c0_1 = arith.constant 0 : index
    %c0_2 = arith.constant 0 : index
    %3 = vector.load %arg2[%c0_1, %c0_2] : memref<8x1024xf32, #tpu.memory_space<vmem>>, vector<8x1024xf32>
    %cst_3 = arith.constant 1.000000e-03 : f32
    %4 = vector.broadcast %cst_3 : f32 to vector<8x1024xf32>
    %5 = arith.mulf %4, %3 : vector<8x1024xf32>
    %6 = arith.addf %2, %5 : vector<8x1024xf32>
    %c0_4 = arith.constant 0 : index
    %c0_5 = arith.constant 0 : index
    %7 = vector.load %arg3[%c0_4, %c0_5] : memref<8x1024xf32, #tpu.memory_space<vmem>>, vector<8x1024xf32>
    tpu.vector_store %arg3[%c0_4, %c0_5], %6 {strides = array<i32>} : memref<8x1024xf32, #tpu.memory_space<vmem>>, vector<8x1024xf32>,
    return
  }
  func.func @transform_0(%arg0: i32) -> (i32, i32) {
    %c0_i32 = arith.constant 0 : i32
    %c0_i32_0 = arith.constant 0 : i32
    return %arg0, %c0_i32 : i32, i32
  }
  func.func @transform_1(%arg0: i32) -> (i32, i32) {
    %c0_i32 = arith.constant 0 : i32
    %c0_i32_0 = arith.constant 0 : i32
    return %arg0, %c0_i32 : i32, i32
  }
  func.func @transform_2(%arg0: i32) -> (i32, i32) {
    %c0_i32 = arith.constant 0 : i32
    %c0_i32_0 = arith.constant 0 : i32
    return %arg0, %c0_i32 : i32, i32
  }
}

</mosaic_0001>

<llo_original>
// kernel: _ema_update_fused.1
$region0: #{_ema_update_fused.1}
  #allocation0 [shape = 'u32[]', space=smem, size = 0x4, offset = 0x4, fixed_abs, tag = 'smem constant byte address 0x4 - core index']
  #allocation1 [shape = 'u32[144,128]{1,0:T(1,128)}', space=vmem, size = 0x12000, scoped, tag = 'internal scratch']
  %s0 = inlined_call_operand.hbm [shape: f32[40,1024], index: 0, kind: input, shape index: {}, may-alias: {0,2}]
  %s1 = inlined_call_operand.vmem [shape: f32[40,1024], index: 1, kind: input, shape index: {}]
  %s2 = inlined_call_operand.hbm [shape: f32[40,1024], index: 2, kind: output, shape index: {}, may-alias: {0,2}]
  %s3 = sld [smem:[#allocation0]]
  $region45: #{_ema_update_fused.1} parent=0
    _
  %s5 = ssub.s32 1, %s3
  %s6 = scalar_select 0, %s5, %s3
  $region1: #{_ema_update_fused.1} parent=0
    #allocation2 [shape = 'u8[65536]{0}', space=vmem, size = 0x10000, scoped, tag = 'input window, operand 0']
    #allocation3 [shape = 's32[2]{0}', space=sflag, size = 0x8, scoped, tag = 'scoped memory for _ema_update_fused.1']
    #allocation4 [shape = 's32[2]{0}', space=sflag, size = 0x8, scoped, tag = 'scoped memory for _ema_update_fused.1']
    #allocation5 [shape = 'u8[65536]{0}', space=vmem, size = 0x10000, scoped, tag = 'output window, operand 0']
    %7 = vsyncpa [#allocation3], 0
    %s8 = scalar_lea.sflag [#allocation3], 1
    %9 = vsyncpa %s8, 0
    %10 = vsyncpa [#allocation4], 0
    %s11 = scalar_lea.sflag [#allocation4], 1
    %12 = vsyncpa %s11, 0
    loop: start=0, step=1, limit=7
    $region2: #{_ema_update_fused.1} parent=1 // loop_pre_header
      _
    $region3: #{_ema_update_fused.1} parent=1 // loop_header
      %s14 = sphi 0, %s18
      %p15 = scmp.ge.s32.totalorder %s14, 7
      %s24 = sphi 0, %s26
      %s27 = sphi 0, %s24
      %s28 = sphi 0, %s27
      %s44 = sphi 0, %s28
      %s50 = sphi 0, %s52
      %s53 = sphi 0, %s50
      %s54 = sphi 0, %s53
      %s70 = sphi 0, %s54
      %s76 = sphi 0, %s78
      %s79 = sphi 0, %s76
      %s80 = sphi 0, %s79
      %s96 = sphi 0, %s80
    $region4: #{_ema_update_fused.1} parent=1 // loop_header_branch
      %17 = sbr.rel (%p15) target = $region8
    $region5: #{_ema_update_fused.1} parent=1 // loop_body
      %s19 = ssub.s32 %s14, 1
      %s20 = ssub.s32 %s14, 2
      %s21 = sadd.s32 %s14, 1
      %s22 = ssub.s32 %s14, %s21
      %p23 = scmp.eq.s32.totalorder %s22, 0
      %s25 = sadd.s32 %s24, 1
      %s26 = scalar_select %p23, %s24, %s25
      %p29 = pneg %p23
      %p30 = scmp.eq.s32.totalorder %s14, 4
      %p31 = por %p29, %p30
      %p32 = scmp.ne.s32.totalorder %s24, %s27
      %p33 = scmp.eq.s32.totalorder %s14, 0
      %p34 = por %p32, %p33
      %p35 = scmp.ne.s32.totalorder %s24, %s27
      %p36 = scmp.eq.s32.totalorder %s19, 4
      %p37 = por %p35, %p36
      %p38 = scmp.ne.s32.totalorder %s27, %s28
      %p39 = scmp.eq.s32.totalorder %s19, 0
      %p40 = por %p38, %p39
      %p41 = scmp.ne.s32.totalorder %s27, %s28
      %p42 = scmp.eq.s32.totalorder %s20, 4
      %p43 = por %p41, %p42
      %p45 = scmp.ne.s32.totalorder %s28, %s44
      %p46 = scmp.eq.s32.totalorder %s20, 0
      %p47 = por %p45, %p46
      %s48 = ssub.s32 %s14, %s21
      %p49 = scmp.eq.s32.totalorder %s48, 0
      %s51 = sadd.s32 %s50, 1
      %s52 = scalar_select %p49, %s50, %s51
      %p55 = pneg %p49
      %p56 = scmp.eq.s32.totalorder %s14, 4
      %p57 = por %p55, %p56
      %p58 = scmp.ne.s32.totalorder %s50, %s53
      %p59 = scmp.eq.s32.totalorder %s14, 0
      %p60 = por %p58, %p59
      %p61 = scmp.ne.s32.totalorder %s50, %s53
      %p62 = scmp.eq.s32.totalorder %s19, 4
      %p63 = por %p61, %p62
      %p64 = scmp.ne.s32.totalorder %s53, %s54
      %p65 = scmp.eq.s32.totalorder %s19, 0
      %p66 = por %p64, %p65
      %p67 = scmp.ne.s32.totalorder %s53, %s54
      %p68 = scmp.eq.s32.totalorder %s20, 4
      %p69 = por %p67, %p68
      %p71 = scmp.ne.s32.totalorder %s54, %s70
      %p72 = scmp.eq.s32.totalorder %s20, 0
      %p73 = por %p71, %p72
      %s74 = ssub.s32 %s14, %s21
      %p75 = scmp.eq.s32.totalorder %s74, 0
      %s77 = sadd.s32 %s76, 1
      %s78 = scalar_select %p75, %s76, %s77
      %p81 = pneg %p75
      %p82 = scmp.eq.s32.totalorder %s14, 4
      %p83 = por %p81, %p82
      %p84 = scmp.ne.s32.totalorder %s76, %s79
      %p85 = scmp.eq.s32.totalorder %s14, 0
      %p86 = por %p84, %p85
      %p87 = scmp.ne.s32.totalorder %s76, %s79
      %p88 = scmp.eq.s32.totalorder %s19, 4
      %p89 = por %p87, %p88
      %p90 = scmp.ne.s32.totalorder %s79, %s80
      %p91 = scmp.eq.s32.totalorder %s19, 0
      %p92 = por %p90, %p91
      %p93 = scmp.ne.s32.totalorder %s79, %s80
      %p94 = scmp.eq.s32.totalorder %s20, 4
      %p95 = por %p93, %p94
      %p97 = scmp.ne.s32.totalorder %s80, %s96
      %p98 = scmp.eq.s32.totalorder %s20, 0
      %p99 = por %p97, %p98
      %p100 = scmp.le.s32.totalorder 1, %s14
      %p101 = scmp.lt.s32.totalorder %s14, 6
      %p102 = pnand %p100, %p101
      %p103 = pneg %p102
      // Predicated region
      $region9: #{_ema_update_fused.1} parent=5 // pred_check
        _
      $region10: #{_ema_update_fused.1} parent=5 // pred_check_branch
        %105 = sbr.rel (%p102) target = $region12
      $region11: #{_ema_update_fused.1} parent=5 // pred_region
        %s106 = ssub.s32 %s14, 1
      $region12: #{_ema_update_fused.1} parent=5 // pred_fallthru
        _
      %p107 = scmp.lt.s32.totalorder %s14, 5
      // Predicated region
      $region13: #{_ema_update_fused.1} parent=5 // pred_check
        %p108 = pneg %p107
      $region14: #{_ema_update_fused.1} parent=5 // pred_check_branch
        %110 = sbr.rel (%p108) target = $region16
      $region15: #{_ema_update_fused.1} parent=5 // pred_region
        // Predicated region
        $region17: #{_ema_update_fused.1} parent=15 // pred_check
          %p111 = pneg %p34
        $region18: #{_ema_update_fused.1} parent=15 // pred_check_branch
          %113 = sbr.rel (%p111) target = $region20
        $region19: #{_ema_update_fused.1} parent=15 // pred_region
          %s114 = sand.u32 %s24, 1
          %s115 = scalar_lea.sflag [#allocation3], %s114
          %s116 = sand.u32 %s24, 1
          %s117 = smul.addr %s116, 64
          %s118 = scalar_lea.vmem [#allocation2], %s117
          %s120 = ssub.s32 1024, 1024
          %121 = vsyncadd %s115, %s120
          %s122 = smul.addr %s14, 8
          %s123 = smul.addr %s122, 128
          %s124 = scalar_lea.hbm %s0, %s123
          %s126 = sshll.u32 %s118, 4
          %s127 = int_to_ptr.vmem [resolvable:$true] %s126
          %129 = dma.hbm_to_vmem [thread:$0]  %s124, 1024, %s127, %s115
        $region20: #{_ema_update_fused.1} parent=15 // pred_fallthru
          _
        // Predicated region
        $region21: #{_ema_update_fused.1} parent=15 // pred_check
          %p130 = pneg %p60
        $region22: #{_ema_update_fused.1} parent=15 // pred_check_branch
          %132 = sbr.rel (%p130) target = $region24
        $region23: #{_ema_update_fused.1} parent=15 // pred_region
          %p133 = scmp.lt.s32.totalorder %s14, 4
          %s134 = scalar_select %p133, %s14, 4
          %s135 = smul.addr %s134, 8
          %s136 = smul.addr %s135, 8
          %s137 = scalar_lea.vmem %s1, %s136
        $region24: #{_ema_update_fused.1} parent=15 // pred_fallthru
          _
      $region16: #{_ema_update_fused.1} parent=5 // pred_fallthru
        _
      %p138 = scmp.le.s32.totalorder 1, %s14
      %p139 = scmp.lt.s32.totalorder %s14, 6
      %p140 = pnand %p138, %p139
      %p141 = pneg %p140
      // Predicated region
      $region25: #{_ema_update_fused.1} parent=5 // pred_check
        _
      $region26: #{_ema_update_fused.1} parent=5 // pred_check_branch
        %143 = sbr.rel (%p140) target = $region28
      $region27: #{_ema_update_fused.1} parent=5 // pred_region
        %s144 = ssub.s32 %s14, 1
        %s145 = sand.u32 %s27, 1
        %s146 = scalar_lea.sflag [#allocation3], %s145
        %s147 = sand.u32 %s27, 1
        %s148 = smul.addr %s147, 64
        %s149 = scalar_lea.vmem [#allocation2], %s148
        // Predicated region
        $region29: #{_ema_update_fused.1} parent=27 // pred_check
          %p150 = pneg %p40
        $region30: #{_ema_update_fused.1} parent=27 // pred_check_branch
          %152 = sbr.rel (%p150) target = $region32
        $region31: #{_ema_update_fused.1} parent=27 // pred_region
          %153 = dma.done %s146, 1024
        $region32: #{_ema_update_fused.1} parent=27 // pred_fallthru
          _
        %s154 = sand.u32 %s27, 1
        %s155 = scalar_lea.sflag [#allocation3], %s154
        %s156 = sand.u32 %s27, 1
        %s157 = smul.addr %s156, 64
        %s158 = scalar_lea.vmem [#allocation2], %s157
        %p159 = pneg %p40
        %p160 = pneg %p37
        %p161 = scmp.lt.s32.totalorder %s19, 4
        %s162 = scalar_select %p161, %s19, 4
        %s163 = smul.addr %s162, 8
        %s164 = smul.addr %s163, 8
        %s165 = scalar_lea.vmem %s1, %s164
        %p166 = pneg %p66
        %p167 = pneg %p63
        %p168 = pneg %p92
        %p169 = pneg %p89
        %s170 = sand.u32 %s79, 1
        %s171 = scalar_lea.sflag [#allocation4], %s170
        %s172 = sand.u32 %s79, 1
        %s173 = smul.addr %s172, 64
        %s174 = scalar_lea.vmem [#allocation5], %s173
        %p175 = scmp.lt.s32.totalorder %s19, 4
        %s176 = scalar_select %p175, %s19, 4
        %s177 = smul.addr %s176, 8
        %s178 = smul.addr %s177, 8
        %s179 = scalar_lea.vmem %s1, %s178
        %v180 = vld [vmem:[%s149] sm:$0xff]
        %v181 = vld [vmem:[%s149 + $0x8] sm:$0xff]
        %v182 = vld [vmem:[%s149 + $0x10] sm:$0xff]
        %v183 = vld [vmem:[%s149 + $0x18] sm:$0xff]
        %v184 = vld [vmem:[%s149 + $0x20] sm:$0xff]
        %v185 = vld [vmem:[%s149 + $0x28] sm:$0xff]
        %v186 = vld [vmem:[%s149 + $0x30] sm:$0xff]
        %v187 = vld [vmem:[%s149 + $0x38] sm:$0xff]
        %v188 = vmul.f32 %v180, 0.999
        %v189 = vmul.f32 %v181, 0.999
        %v190 = vmul.f32 %v182, 0.999
        %v191 = vmul.f32 %v183, 0.999
        %v192 = vmul.f32 %v184, 0.999
        %v193 = vmul.f32 %v185, 0.999
        %v194 = vmul.f32 %v186, 0.999
        %v195 = vmul.f32 %v187, 0.999
        %v196 = vld [vmem:[%s179] sm:$0xff]
        %v197 = vld [vmem:[%s179 + $0x8] sm:$0xff]
        %v198 = vld [vmem:[%s179 + $0x10] sm:$0xff]
        %v199 = vld [vmem:[%s179 + $0x18] sm:$0xff]
        %v200 = vld [vmem:[%s179 + $0x20] sm:$0xff]
        %v201 = vld [vmem:[%s179 + $0x28] sm:$0xff]
        %v202 = vld [vmem:[%s179 + $0x30] sm:$0xff]
        %v203 = vld [vmem:[%s179 + $0x38] sm:$0xff]
        %v204 = vmul.f32 %v196, 0.001
        %v205 = vmul.f32 %v197, 0.001
        %v206 = vmul.f32 %v198, 0.001
        %v207 = vmul.f32 %v199, 0.001
        %v208 = vmul.f32 %v200, 0.001
        %v209 = vmul.f32 %v201, 0.001
        %v210 = vmul.f32 %v202, 0.001
        %v211 = vmul.f32 %v203, 0.001
        %v212 = vadd.f32 %v188, %v204
        %v213 = vadd.f32 %v189, %v205
        %v214 = vadd.f32 %v190, %v206
        %v215 = vadd.f32 %v191, %v207
        %v216 = vadd.f32 %v192, %v208
        %v217 = vadd.f32 %v193, %v209
        %v218 = vadd.f32 %v194, %v210
        %v219 = vadd.f32 %v195, %v211
        %220 = vst [vmem:[%s174] sm:$0xff] %v212
        %221 = vst [vmem:[%s174 + $0x8] sm:$0xff] %v213
        %222 = vst [vmem:[%s174 + $0x10] sm:$0xff] %v214
        %223 = vst [vmem:[%s174 + $0x18] sm:$0xff] %v215
        %224 = vst [vmem:[%s174 + $0x20] sm:$0xff] %v216
        %225 = vst [vmem:[%s174 + $0x28] sm:$0xff] %v217
        %226 = vst [vmem:[%s174 + $0x30] sm:$0xff] %v218
        %227 = vst [vmem:[%s174 + $0x38] sm:$0xff] %v219
        %s228 = sand.u32 %s79, 1
        %s229 = scalar_lea.sflag [#allocation4], %s228
        %s230 = sand.u32 %s79, 1
        %s231 = smul.addr %s230, 64
        %s232 = scalar_lea.vmem [#allocation5], %s231
        // Predicated region
        $region33: #{_ema_update_fused.1} parent=27 // pred_check
          %p233 = pneg %p89
        $region34: #{_ema_update_fused.1} parent=27 // pred_check_branch
          %235 = sbr.rel (%p233) target = $region36
        $region35: #{_ema_update_fused.1} parent=27 // pred_region
          %s237 = ssub.s32 1024, 1024
          %238 = vsyncadd %s229, %s237
          %s239 = smul.addr %s19, 8
          %s240 = smul.addr %s239, 128
          %s241 = scalar_lea.hbm %s2, %s240
          %s243 = sshll.u32 %s232, 4
          %s244 = int_to_ptr.vmem [resolvable:$true] %s243
          %246 = dma.vmem_to_hbm [thread:$0]  %s244, 1024, %s241, %s229
        $region36: #{_ema_update_fused.1} parent=27 // pred_fallthru
          _
      $region28: #{_ema_update_fused.1} parent=5 // pred_fallthru
        _
      %p247 = scmp.le.s32.totalorder 2, %s14
      // Predicated region
      $region37: #{_ema_update_fused.1} parent=5 // pred_check
        %p248 = pneg %p247
      $region38: #{_ema_update_fused.1} parent=5 // pred_check_branch
        %250 = sbr.rel (%p248) target = $region40
      $region39: #{_ema_update_fused.1} parent=5 // pred_region
        %s251 = ssub.s32 %s14, 2
        // Predicated region
        $region41: #{_ema_update_fused.1} parent=39 // pred_check
          %p252 = pneg %p95
        $region42: #{_ema_update_fused.1} parent=39 // pred_check_branch
          %254 = sbr.rel (%p252) target = $region44
        $region43: #{_ema_update_fused.1} parent=39 // pred_region
          %s255 = sand.u32 %s80, 1
          %s256 = scalar_lea.sflag [#allocation4], %s255
          %s257 = sand.u32 %s80, 1
          %s258 = smul.addr %s257, 64
          %s259 = scalar_lea.vmem [#allocation5], %s258
          %260 = dma.done %s256, 1024
        $region44: #{_ema_update_fused.1} parent=39 // pred_fallthru
          _
      $region40: #{_ema_update_fused.1} parent=5 // pred_fallthru
        _
    $region6: #{_ema_update_fused.1} parent=1 // loop_footer
      %s18 = sadd.s32 1, %s14
    $region7: #{_ema_update_fused.1} parent=1 // loop_footer_branch
      %13 = sbr.rel target = $region3
    $region8: #{_ema_update_fused.1} parent=1 // loop_exit
      _
    %261 = vsyncpa [#allocation3], 1
    %s262 = scalar_lea.sflag [#allocation3], 1
    %263 = vsyncpa %s262, 1
    %264 = vsyncpa [#allocation4], 1
    %s265 = scalar_lea.sflag [#allocation4], 1
    %266 = vsyncpa %s265, 1

</llo_original>
